<compile_context>
chip_gen: v7x
topology: tpu7x:2x2x1
jax: 0.10.0
libtpu: 0.0.40
codegen_flags: <defaults>
</compile_context>

<pallas_src>
import math

import jax
import jax.numpy as jnp
from jax import lax
from jax.experimental import pallas as pl
from jax.experimental.pallas import tpu as pltpu


def _round_up(x: int, m: int) -> int:
    return ((x + m - 1) // m) * m


def _linear_kernel_noacc(x_ref, w_ref, b_ref, o_ref):
    """Single-shot x @ w.T + bias when the whole K dimension fits one block."""
    acc = lax.dot_general(
        x_ref[...],
        w_ref[...],
        dimension_numbers=(((1,), (1,)), ((), ())),  # contract K with K (w is (tn, tk))
        preferred_element_type=jnp.float32,
    )
    o_ref[...] = (acc + b_ref[...].astype(jnp.float32)).astype(o_ref.dtype)


def _linear_kernel_acc(x_ref, w_ref, b_ref, o_ref, acc_ref):
    """Tiled matmul with f32 accumulator over the K grid axis (last axis)."""
    k = pl.program_id(2)

    @pl.when(k == 0)
    def _():
        acc_ref[...] = jnp.zeros_like(acc_ref)

    acc_ref[...] += lax.dot_general(
        x_ref[...],
        w_ref[...],
        dimension_numbers=(((1,), (1,)), ((), ())),  # contract K with K (w is (tn, tk))
        preferred_element_type=jnp.float32,
    )

    @pl.when(k == pl.num_programs(2) - 1)
    def _():
        o_ref[...] = (acc_ref[...] + b_ref[...].astype(jnp.float32)).astype(o_ref.dtype)


def out_grad_only_linear(x, weight, bias=None, *, tm=None, tn=None, tk=None):
    """Forward of OutGradOnlyLinear: x @ weight.T + bias.

    x:      (M, K)
    weight: (N, K)   (PyTorch (out_features, in_features) layout, not transposed here)
    bias:   (N,) or None
    """
    M, K = x.shape
    N, K2 = weight.shape
    assert K == K2, "in_features mismatch"

    itemsize = jnp.dtype(x.dtype).itemsize
    # Sublane packing: f32 -> 8 rows/vreg, bf16 -> 16, int8/fp8 -> 32.
    m_align = 8 if itemsize >= 4 else (16 if itemsize == 2 else 32)

    # Tile selection: MXU-sized blocks, capped so double-buffered VMEM stays small.
    if tm is None:
        tm = min(256, _round_up(M, m_align))
    if tn is None:
        tn = min(512, _round_up(N, 128))
    if tk is None:
        k128 = _round_up(K, 128)
        # Collapse the K grid axis entirely when K fits a single (modest) block;
        # otherwise use a K tile sized by dtype (wider for 16-bit inputs).
        single_block_cap = 1024 if itemsize >= 4 else 2048
        tk = k128 if k128 <= single_block_cap else (512 if itemsize >= 4 else 1024)

    Mp, Np, Kp = _round_up(M, tm), _round_up(N, tn), _round_up(K, tk)

    # Zero-copy when already aligned; pad only ragged dims.
    xp = x if (Mp == M and Kp == K) else jnp.pad(x, ((0, Mp - M), (0, Kp - K)))
    wp = (
        weight
        if (Np == N and Kp == K)
        else jnp.pad(weight, ((0, Np - N), (0, Kp - K)))
    )
    if bias is None:
        bp = jnp.zeros((1, Np), dtype=x.dtype)
    else:
        b = bias if Np == N else jnp.pad(bias, (0, Np - N))
        bp = b.reshape(1, Np)

    gm, gn, gk = Mp // tm, Np // tn, Kp // tk

    cost = pl.CostEstimate(
        flops=2 * M * N * K,
        transcendentals=0,
        bytes_accessed=(
            M * K * itemsize
            + N * K * jnp.dtype(weight.dtype).itemsize
            + N * itemsize
            + M * N * itemsize
        ),
    )

    if gk == 1:
        out = pl.pallas_call(
            _linear_kernel_noacc,
            out_shape=jax.ShapeDtypeStruct((Mp, Np), x.dtype),
            grid_spec=pltpu.PrefetchScalarGridSpec(
                num_scalar_prefetch=0,
                grid=(gm, gn),
                in_specs=[
                    pl.BlockSpec((tm, Kp), lambda i, j: (i, 0)),  # x tile
                    pl.BlockSpec((tn, Kp), lambda i, j: (j, 0)),  # weight tile (N, K)
                    pl.BlockSpec((1, tn), lambda i, j: (0, j)),   # bias tile
                ],
                out_specs=pl.BlockSpec((tm, tn), lambda i, j: (i, j)),
            ),
            compiler_params=pltpu.CompilerParams(
                dimension_semantics=("parallel", "parallel")
            ),
            cost_estimate=cost,
        )(xp, wp, bp)
    else:
        out = pl.pallas_call(
            _linear_kernel_acc,
            out_shape=jax.ShapeDtypeStruct((Mp, Np), x.dtype),
            grid_spec=pltpu.PrefetchScalarGridSpec(
                num_scalar_prefetch=0,
                grid=(gm, gn, gk),
                in_specs=[
                    pl.BlockSpec((tm, tk), lambda i, j, k: (i, k)),  # x tile
                    pl.BlockSpec((tn, tk), lambda i, j, k: (j, k)),  # weight tile (N, K)
                    pl.BlockSpec((1, tn), lambda i, j, k: (0, j)),   # bias tile
                ],
                out_specs=pl.BlockSpec((tm, tn), lambda i, j, k: (i, j)),
                scratch_shapes=[pltpu.VMEM((tm, tn), jnp.float32)],
            ),
            compiler_params=pltpu.CompilerParams(
                dimension_semantics=("parallel", "parallel", "arbitrary")
            ),
            cost_estimate=cost,
        )(xp, wp, bp)

    if (Mp, Np) != (M, N):
        out = out[:M, :N]
    return out


def init_params(key, in_features, out_features, dtype=jnp.float32):
    """Deterministic init mirroring nn.Linear's reset_parameters.

    kaiming_uniform_(a=sqrt(5)) on a (out, in) weight gives bound = 1/sqrt(in_features);
    the bias bound is also 1/sqrt(fan_in).
    """
    kw, kb = jax.random.split(key)
    bound = 1.0 / math.sqrt(in_features)
    weight = jax.random.uniform(
        kw, (out_features, in_features), dtype=dtype, minval=-bound, maxval=bound
    )
    bias = jax.random.uniform(
        kb, (out_features,), dtype=dtype, minval=-bound, maxval=bound
    )
    return weight, bias


if __name__ == "__main__":
    key = jax.random.PRNGKey(0)

    # --- Test 1: small, K fits one block (no-accumulator fast path) ---------
    batch, in_features, out_features = 16, 512, 512
    kx, kp, key = jax.random.split(key, 3)
    x = jax.random.normal(kx, (batch, in_features), dtype=jnp.float32)
    weight, bias = init_params(kp, in_features, out_features)

    y = jax.block_until_ready(out_grad_only_linear(x, weight, bias))
    y_ref = x @ weight.T + bias
    assert y.shape == (batch, out_features)
    assert jnp.allclose(y, y_ref, atol=1e-4, rtol=1e-4)

    # --- Test 2: ragged shapes -> padding + K-axis accumulation path --------
    batch2, in2, out2 = 10, 640, 384
    kx2, kp2, key = jax.random.split(key, 3)
    x2 = jax.random.normal(kx2, (batch2, in2), dtype=jnp.float32)
    w2, b2 = init_params(kp2, in2, out2)

    y2 = jax.block_until_ready(
        out_grad_only_linear(x2, w2, b2, tm=128, tn=256, tk=256)
    )
    y2_ref = x2 @ w2.T + b2
    assert y2.shape == (batch2, out2)
    assert jnp.allclose(y2, y2_ref, atol=1e-4, rtol=1e-4)

    # --- Test 3: default tiles, K > single-block cap, ragged N, no bias -----
    batch3, in3, out3 = 64, 1536, 1280
    kx3, kp3, key = jax.random.split(key, 3)
    x3 = jax.random.normal(kx3, (batch3, in3), dtype=jnp.float32)
    w3, _ = init_params(kp3, in3, out3)

    y3 = jax.block_until_ready(out_grad_only_linear(x3, w3, None))
    y3_ref = x3 @ w3.T
    assert y3.shape == (batch3, out3)
    assert jnp.allclose(y3, y3_ref, atol=1e-3, rtol=1e-3)

    # --- Test 4: bf16 inputs, f32 accumulation, bf16 output -----------------
    batch4, in4, out4 = 32, 2304, 512
    kx4, kp4, key = jax.random.split(key, 3)
    x4 = jax.random.normal(kx4, (batch4, in4), dtype=jnp.float32).astype(jnp.bfloat16)
    w4f, b4f = init_params(kp4, in4, out4)
    w4, b4 = w4f.astype(jnp.bfloat16), b4f.astype(jnp.bfloat16)

    y4 = jax.block_until_ready(out_grad_only_linear(x4, w4, b4))
    y4_ref = (
        x4.astype(jnp.float32) @ w4.astype(jnp.float32).T + b4.astype(jnp.float32)
    ).astype(jnp.bfloat16)
    assert y4.shape == (batch4, out4)
    assert jnp.allclose(
        y4.astype(jnp.float32), y4_ref.astype(jnp.float32), atol=3e-2, rtol=3e-2
    )

    print("KERNEL_OK")
</pallas_src>

<mosaic_0001>
module attributes {stable_mosaic.version = 11 : i64} {
  func.func @_linear_kernel_noacc(%arg0: i32, %arg1: i32, %arg2: memref<16x512xf32, #tpu.memory_space<vmem>>, %arg3: memref<512x512xf32, #tpu.memory_space<vmem>>, %arg4: memref<1x512xf32, #tpu.memory_space<vmem>>, %arg5: memref<16x512xf32, #tpu.memory_space<vmem>>) attributes {dimension_semantics = [#tpu.dimension_semantics<parallel>, #tpu.dimension_semantics<parallel>], iteration_bounds = array<i64: 1, 1>, scalar_prefetch = 0 : i64, scratch_operands = 0 : i64, tpu.core_type = #tpu.core_type<tc>, window_params = [{transform_indices = @transform_0, window_bounds = array<i64: 16, 512>}, {transform_indices = @transform_1, window_bounds = array<i64: 512, 512>}, {transform_indices = @transform_2, window_bounds = array<i64: 1, 512>}, {transform_indices = @transform_3, window_bounds = array<i64: 16, 512>}]} {
    %c0 = arith.constant 0 : index
    %c0_0 = arith.constant 0 : index
    %0 = vector.load %arg2[%c0, %c0_0] : memref<16x512xf32, #tpu.memory_space<vmem>>, vector<16x512xf32>
    %c0_1 = arith.constant 0 : index
    %c0_2 = arith.constant 0 : index
    %1 = vector.load %arg3[%c0_1, %c0_2] : memref<512x512xf32, #tpu.memory_space<vmem>>, vector<512x512xf32>
    %cst = arith.constant dense<0.000000e+00> : vector<16x512xf32>
    %2 = tpu.matmul %0, %1, %cst {dimension_numbers = #tpu.dot_dimension_numbers<[1], [1], [0], [0], [0, 0, 1, 0], [], []>} : vector<16x512xf32>, vector<512x512xf32>, vector<16x512xf32> -> vector<16x512xf32>
    %c0_3 = arith.constant 0 : index
    %c0_4 = arith.constant 0 : index
    %3 = vector.load %arg4[%c0_3, %c0_4] : memref<1x512xf32, #tpu.memory_space<vmem>>, vector<1x512xf32>
    %4 = vector.broadcast %3 : vector<1x512xf32> to vector<16x512xf32>
    %5 = arith.addf %2, %4 : vector<16x512xf32>
    %c0_5 = arith.constant 0 : index
    %c0_6 = arith.constant 0 : index
    %6 = vector.load %arg5[%c0_5, %c0_6] : memref<16x512xf32, #tpu.memory_space<vmem>>, vector<16x512xf32>
    tpu.vector_store %arg5[%c0_5, %c0_6], %5 {strides = array<i32>} : memref<16x512xf32, #tpu.memory_space<vmem>>, vector<16x512xf32>,
    return
  }
  func.func @transform_0(%arg0: i32, %arg1: i32) -> (i32, i32) {
    %c0_i32 = arith.constant 0 : i32
    %c0_i32_0 = arith.constant 0 : i32
    return %arg0, %c0_i32 : i32, i32
  }
  func.func @transform_1(%arg0: i32, %arg1: i32) -> (i32, i32) {
    %c0_i32 = arith.constant 0 : i32
    %c0_i32_0 = arith.constant 0 : i32
    return %arg1, %c0_i32 : i32, i32
  }
  func.func @transform_2(%arg0: i32, %arg1: i32) -> (i32, i32) {
    %c0_i32 = arith.constant 0 : i32
    %c0_i32_0 = arith.constant 0 : i32
    return %c0_i32, %arg1 : i32, i32
  }
  func.func @transform_3(%arg0: i32, %arg1: i32) -> (i32, i32) {
    %c0_i32 = arith.constant 0 : i32
    return %arg0, %arg1 : i32, i32
  }
}

</mosaic_0001>

<llo_original>
// kernel: tpu_custom_call.1
$region0: #{tpu_custom_call.1}
  #allocation0 [shape = 'u32[]', space=smem, size = 0x4, offset = 0x4, fixed_abs, tag = 'smem constant byte address 0x4 - core index']
  #allocation1 [shape = 'u32[144,128]{1,0:T(1,128)}', space=vmem, size = 0x12000, scoped, tag = 'internal scratch']
  %s0 = inlined_call_operand.hbm [shape: f32[16,512], index: 0, kind: input, shape index: {}]
  %s1 = inlined_call_operand.hbm [shape: f32[512,512], index: 1, kind: input, shape index: {}]
  %s2 = inlined_call_operand.vmem [shape: f32[1,512], index: 2, kind: input, shape index: {}]
  %s3 = inlined_call_operand.hbm [shape: f32[16,512], index: 3, kind: output, shape index: {}]
  %s4 = sld [smem:[#allocation0]]
  $region30: #{tpu_custom_call.1} parent=0
    _
  %s6 = ssub.s32 1, %s4
  %s7 = scalar_select 0, %s6, %s4
  $region1: #{tpu_custom_call.1} parent=0
    #allocation2 [shape = 'u8[32768]{0}', space=vmem, size = 0x8000, scoped, tag = 'input window, operand 0, single buffered']
    #allocation3 [shape = 's32[1]{0}', space=sflag, size = 0x4, scoped, tag = 'scoped memory for tpu_custom_call.1']
    #allocation4 [shape = 's32[1]{0}', space=sflag, size = 0x4, scoped, tag = 'scoped memory for tpu_custom_call.1']
    #allocation5 [shape = 'u8[1048576]{0}', space=vmem, size = 0x100000, scoped, tag = 'input window, operand 1, single buffered']
    #allocation6 [shape = 's32[1]{0}', space=sflag, size = 0x4, scoped, tag = 'scoped memory for tpu_custom_call.1']
    #allocation7 [shape = 'u8[32768]{0}', space=vmem, size = 0x8000, scoped, tag = 'output window, operand 0, single buffered']
    %8 = vsyncpa [#allocation3], 0
    %9 = vsyncpa [#allocation6], 0
    %10 = vsyncpa [#allocation4], 0
    // Predicated region
    $region2: #{tpu_custom_call.1} parent=1 // pred_check
      _
    $region3: #{tpu_custom_call.1} parent=1 // pred_check_branch
      %12 = sbr.rel (0) target = $region5
    $region4: #{tpu_custom_call.1} parent=1 // pred_region
      %s14 = ssub.s32 1024, 1024
      %15 = vsyncadd [#allocation3], %s14
      %s16 = sshll.u32 [#allocation2], 4
      %s17 = int_to_ptr.vmem [resolvable:$true] %s16
      %22 = dma.hbm_to_vmem [thread:$0]  %s0, 1024, %s17, [#allocation3], 512, 512, 32
    $region5: #{tpu_custom_call.1} parent=1 // pred_fallthru
      _
    // Predicated region
    $region6: #{tpu_custom_call.1} parent=1 // pred_check
      _
    $region7: #{tpu_custom_call.1} parent=1 // pred_check_branch
      %24 = sbr.rel (0) target = $region9
    $region8: #{tpu_custom_call.1} parent=1 // pred_region
      %s26 = ssub.s32 32768, 32768
      %27 = vsyncadd [#allocation6], %s26
      %s28 = sshll.u32 [#allocation5], 4
      %s29 = int_to_ptr.vmem [resolvable:$true] %s28
      %34 = dma.hbm_to_vmem [thread:$0]  %s1, 32768, %s29, [#allocation6], 512, 512, 32
    $region9: #{tpu_custom_call.1} parent=1 // pred_fallthru
      _
    // Predicated region
    $region10: #{tpu_custom_call.1} parent=1 // pred_check
      _
    $region11: #{tpu_custom_call.1} parent=1 // pred_check_branch
      %36 = sbr.rel (0) target = $region13
    $region12: #{tpu_custom_call.1} parent=1 // pred_region
      _
    $region13: #{tpu_custom_call.1} parent=1 // pred_fallthru
      _
    // Predicated region
    $region14: #{tpu_custom_call.1} parent=1 // pred_check
      _
    $region15: #{tpu_custom_call.1} parent=1 // pred_check_branch
      %38 = sbr.rel (0) target = $region17
    $region16: #{tpu_custom_call.1} parent=1 // pred_region
      %39 = dma.done [#allocation3], 1024
    $region17: #{tpu_custom_call.1} parent=1 // pred_fallthru
      _
    // Predicated region
    $region18: #{tpu_custom_call.1} parent=1 // pred_check
      _
    $region19: #{tpu_custom_call.1} parent=1 // pred_check_branch
      %41 = sbr.rel (0) target = $region21
    $region20: #{tpu_custom_call.1} parent=1 // pred_region
      %42 = dma.done [#allocation6], 32768
    $region21: #{tpu_custom_call.1} parent=1 // pred_fallthru
      _
    %v43 = vld [vmem:[#allocation2] sm:$0xff]
    %v44 = vld [vmem:[#allocation2 + $0x8] sm:$0xff]
    %v45 = vld [vmem:[#allocation2 + $0x10] sm:$0xff]
    %v46 = vld [vmem:[#allocation2 + $0x18] sm:$0xff]
    %v47 = vld [vmem:[#allocation2 + $0x20] sm:$0xff]
    %v48 = vld [vmem:[#allocation2 + $0x28] sm:$0xff]
    %v49 = vld [vmem:[#allocation2 + $0x30] sm:$0xff]
    %v50 = vld [vmem:[#allocation2 + $0x38] sm:$0xff]
    %v51 = vld [vmem:[#allocation5] sm:$0xff]
    %v52 = vld [vmem:[#allocation5 + $0x8] sm:$0xff]
    %v53 = vld [vmem:[#allocation5 + $0x10] sm:$0xff]
    %v54 = vld [vmem:[#allocation5 + $0x18] sm:$0xff]
    %v55 = vld [vmem:[#allocation5 + $0x20] sm:$0xff]
    %v56 = vld [vmem:[#allocation5 + $0x28] sm:$0xff]
    %v57 = vld [vmem:[#allocation5 + $0x30] sm:$0xff]
    %v58 = vld [vmem:[#allocation5 + $0x38] sm:$0xff]
    %v59 = vld [vmem:[#allocation5 + $0x40] sm:$0xff]
    %v60 = vld [vmem:[#allocation5 + $0x48] sm:$0xff]
    %v61 = vld [vmem:[#allocation5 + $0x50] sm:$0xff]
    %v62 = vld [vmem:[#allocation5 + $0x58] sm:$0xff]
    %v63 = vld [vmem:[#allocation5 + $0x60] sm:$0xff]
    %v64 = vld [vmem:[#allocation5 + $0x68] sm:$0xff]
    %v65 = vld [vmem:[#allocation5 + $0x70] sm:$0xff]
    %v66 = vld [vmem:[#allocation5 + $0x78] sm:$0xff]
    %v67 = vld [vmem:[#allocation5 + $0x80] sm:$0xff]
    %v68 = vld [vmem:[#allocation5 + $0x88] sm:$0xff]
    %v69 = vld [vmem:[#allocation5 + $0x90] sm:$0xff]
    %v70 = vld [vmem:[#allocation5 + $0x98] sm:$0xff]
    %v71 = vld [vmem:[#allocation5 + $0xa0] sm:$0xff]
    %v72 = vld [vmem:[#allocation5 + $0xa8] sm:$0xff]
    %v73 = vld [vmem:[#allocation5 + $0xb0] sm:$0xff]
    %v74 = vld [vmem:[#allocation5 + $0xb8] sm:$0xff]
    %v75 = vld [vmem:[#allocation5 + $0xc0] sm:$0xff]
    %v76 = vld [vmem:[#allocation5 + $0xc8] sm:$0xff]
    %v77 = vld [vmem:[#allocation5 + $0xd0] sm:$0xff]
    %v78 = vld [vmem:[#allocation5 + $0xd8] sm:$0xff]
    %v79 = vld [vmem:[#allocation5 + $0xe0] sm:$0xff]
    %v80 = vld [vmem:[#allocation5 + $0xe8] sm:$0xff]
    %v81 = vld [vmem:[#allocation5 + $0xf0] sm:$0xff]
    %v82 = vld [vmem:[#allocation5 + $0xf8] sm:$0xff]
    %v83 = vld [vmem:[#allocation5 + $0x100] sm:$0xff]
    %v84 = vld [vmem:[#allocation5 + $0x108] sm:$0xff]
    %v85 = vld [vmem:[#allocation5 + $0x110] sm:$0xff]
    %v86 = vld [vmem:[#allocation5 + $0x118] sm:$0xff]
    %v87 = vld [vmem:[#allocation5 + $0x120] sm:$0xff]
    %v88 = vld [vmem:[#allocation5 + $0x128] sm:$0xff]
    %v89 = vld [vmem:[#allocation5 + $0x130] sm:$0xff]
    %v90 = vld [vmem:[#allocation5 + $0x138] sm:$0xff]
    %v91 = vld [vmem:[#allocation5 + $0x140] sm:$0xff]
    %v92 = vld [vmem:[#allocation5 + $0x148] sm:$0xff]
    %v93 = vld [vmem:[#allocation5 + $0x150] sm:$0xff]
    %v94 = vld [vmem:[#allocation5 + $0x158] sm:$0xff]
    %v95 = vld [vmem:[#allocation5 + $0x160] sm:$0xff]
    %v96 = vld [vmem:[#allocation5 + $0x168] sm:$0xff]
    %v97 = vld [vmem:[#allocation5 + $0x170] sm:$0xff]
    %v98 = vld [vmem:[#allocation5 + $0x178] sm:$0xff]
    %v99 = vld [vmem:[#allocation5 + $0x180] sm:$0xff]
    %v100 = vld [vmem:[#allocation5 + $0x188] sm:$0xff]
    %v101 = vld [vmem:[#allocation5 + $0x190] sm:$0xff]
    %v102 = vld [vmem:[#allocation5 + $0x198] sm:$0xff]
    %v103 = vld [vmem:[#allocation5 + $0x1a0] sm:$0xff]
    %v104 = vld [vmem:[#allocation5 + $0x1a8] sm:$0xff]
    %v105 = vld [vmem:[#allocation5 + $0x1b0] sm:$0xff]
    %v106 = vld [vmem:[#allocation5 + $0x1b8] sm:$0xff]
    %v107 = vld [vmem:[#allocation5 + $0x1c0] sm:$0xff]
    %v108 = vld [vmem:[#allocation5 + $0x1c8] sm:$0xff]
    %v109 = vld [vmem:[#allocation5 + $0x1d0] sm:$0xff]
    %v110 = vld [vmem:[#allocation5 + $0x1d8] sm:$0xff]
    %v111 = vld [vmem:[#allocation5 + $0x1e0] sm:$0xff]
    %v112 = vld [vmem:[#allocation5 + $0x1e8] sm:$0xff]
    %v113 = vld [vmem:[#allocation5 + $0x1f0] sm:$0xff]
    %v114 = vld [vmem:[#allocation5 + $0x1f8] sm:$0xff]
    %v115 = vld [vmem:[#allocation5 + $0x200] sm:$0xff]
    %v116 = vld [vmem:[#allocation5 + $0x208] sm:$0xff]
    %v117 = vld [vmem:[#allocation5 + $0x210] sm:$0xff]
    %v118 = vld [vmem:[#allocation5 + $0x218] sm:$0xff]
    %v119 = vld [vmem:[#allocation5 + $0x220] sm:$0xff]
    %v120 = vld [vmem:[#allocation5 + $0x228] sm:$0xff]
    %v121 = vld [vmem:[#allocation5 + $0x230] sm:$0xff]
    %v122 = vld [vmem:[#allocation5 + $0x238] sm:$0xff]
    %v123 = vld [vmem:[#allocation5 + $0x240] sm:$0xff]
    %v124 = vld [vmem:[#allocation5 + $0x248] sm:$0xff]
    %v125 = vld [vmem:[#allocation5 + $0x250] sm:$0xff]
    %v126 = vld [vmem:[#allocation5 + $0x258] sm:$0xff]
    %v127 = vld [vmem:[#allocation5 + $0x260] sm:$0xff]
    %v128 = vld [vmem:[#allocation5 + $0x268] sm:$0xff]
    %v129 = vld [vmem:[#allocation5 + $0x270] sm:$0xff]
    %v130 = vld [vmem:[#allocation5 + $0x278] sm:$0xff]
    %v131 = vld [vmem:[#allocation5 + $0x280] sm:$0xff]
    %v132 = vld [vmem:[#allocation5 + $0x288] sm:$0xff]
    %v133 = vld [vmem:[#allocation5 + $0x290] sm:$0xff]
    %v134 = vld [vmem:[#allocation5 + $0x298] sm:$0xff]
    %v135 = vld [vmem:[#allocation5 + $0x2a0] sm:$0xff]
    %v136 = vld [vmem:[#allocation5 + $0x2a8] sm:$0xff]
    %v137 = vld [vmem:[#allocation5 + $0x2b0] sm:$0xff]
    %v138 = vld [vmem:[#allocation5 + $0x2b8] sm:$0xff]
    %v139 = vld [vmem:[#allocation5 + $0x2c0] sm:$0xff]
    %v140 = vld [vmem:[#allocation5 + $0x2c8] sm:$0xff]
    %v141 = vld [vmem:[#allocation5 + $0x2d0] sm:$0xff]
    %v142 = vld [vmem:[#allocation5 + $0x2d8] sm:$0xff]
    %v143 = vld [vmem:[#allocation5 + $0x2e0] sm:$0xff]
    %v144 = vld [vmem:[#allocation5 + $0x2e8] sm:$0xff]
    %v145 = vld [vmem:[#allocation5 + $0x2f0] sm:$0xff]
    %v146 = vld [vmem:[#allocation5 + $0x2f8] sm:$0xff]
    %v147 = vld [vmem:[#allocation5 + $0x300] sm:$0xff]
    %v148 = vld [vmem:[#allocation5 + $0x308] sm:$0xff]
    %v149 = vld [vmem:[#allocation5 + $0x310] sm:$0xff]
    %v150 = vld [vmem:[#allocation5 + $0x318] sm:$0xff]
    %v151 = vld [vmem:[#allocation5 + $0x320] sm:$0xff]
    %v152 = vld [vmem:[#allocation5 + $0x328] sm:$0xff]
    %v153 = vld [vmem:[#allocation5 + $0x330] sm:$0xff]
    %v154 = vld [vmem:[#allocation5 + $0x338] sm:$0xff]
    %v155 = vld [vmem:[#allocation5 + $0x340] sm:$0xff]
    %v156 = vld [vmem:[#allocation5 + $0x348] sm:$0xff]
    %v157 = vld [vmem:[#allocation5 + $0x350] sm:$0xff]
    %v158 = vld [vmem:[#allocation5 + $0x358] sm:$0xff]
    %v159 = vld [vmem:[#allocation5 + $0x360] sm:$0xff]
    %v160 = vld [vmem:[#allocation5 + $0x368] sm:$0xff]
    %v161 = vld [vmem:[#allocation5 + $0x370] sm:$0xff]
    %v162 = vld [vmem:[#allocation5 + $0x378] sm:$0xff]
    %v163 = vld [vmem:[#allocation5 + $0x380] sm:$0xff]
    %v164 = vld [vmem:[#allocation5 + $0x388] sm:$0xff]
    %v165 = vld [vmem:[#allocation5 + $0x390] sm:$0xff]
    %v166 = vld [vmem:[#allocation5 + $0x398] sm:$0xff]
    %v167 = vld [vmem:[#allocation5 + $0x3a0] sm:$0xff]
    %v168 = vld [vmem:[#allocation5 + $0x3a8] sm:$0xff]
    %v169 = vld [vmem:[#allocation5 + $0x3b0] sm:$0xff]
    %v170 = vld [vmem:[#allocation5 + $0x3b8] sm:$0xff]
    %v171 = vld [vmem:[#allocation5 + $0x3c0] sm:$0xff]
    %v172 = vld [vmem:[#allocation5 + $0x3c8] sm:$0xff]
    %v173 = vld [vmem:[#allocation5 + $0x3d0] sm:$0xff]
    %v174 = vld [vmem:[#allocation5 + $0x3d8] sm:$0xff]
    %v175 = vld [vmem:[#allocation5 + $0x3e0] sm:$0xff]
    %v176 = vld [vmem:[#allocation5 + $0x3e8] sm:$0xff]
    %v177 = vld [vmem:[#allocation5 + $0x3f0] sm:$0xff]
    %v178 = vld [vmem:[#allocation5 + $0x3f8] sm:$0xff]
    %v179 = vld [vmem:[#allocation5 + $0x400] sm:$0xff]
    %v180 = vld [vmem:[#allocation5 + $0x408] sm:$0xff]
    %v181 = vld [vmem:[#allocation5 + $0x410] sm:$0xff]
    %v182 = vld [vmem:[#allocation5 + $0x418] sm:$0xff]
    %v183 = vld [vmem:[#allocation5 + $0x420] sm:$0xff]
    %v184 = vld [vmem:[#allocation5 + $0x428] sm:$0xff]
    %v185 = vld [vmem:[#allocation5 + $0x430] sm:$0xff]
    %v186 = vld [vmem:[#allocation5 + $0x438] sm:$0xff]
    %v187 = vld [vmem:[#allocation5 + $0x440] sm:$0xff]
    %v188 = vld [vmem:[#allocation5 + $0x448] sm:$0xff]
    %v189 = vld [vmem:[#allocation5 + $0x450] sm:$0xff]
    %v190 = vld [vmem:[#allocation5 + $0x458] sm:$0xff]
    %v191 = vld [vmem:[#allocation5 + $0x460] sm:$0xff]
    %v192 = vld [vmem:[#allocation5 + $0x468] sm:$0xff]
    %v193 = vld [vmem:[#allocation5 + $0x470] sm:$0xff]
    %v194 = vld [vmem:[#allocation5 + $0x478] sm:$0xff]
    %v195 = vld [vmem:[#allocation5 + $0x480] sm:$0xff]
    %v196 = vld [vmem:[#allocation5 + $0x488] sm:$0xff]
    %v197 = vld [vmem:[#allocation5 + $0x490] sm:$0xff]
    %v198 = vld [vmem:[#allocation5 + $0x498] sm:$0xff]
    %v199 = vld [vmem:[#allocation5 + $0x4a0] sm:$0xff]
    %v200 = vld [vmem:[#allocation5 + $0x4a8] sm:$0xff]
    %v201 = vld [vmem:[#allocation5 + $0x4b0] sm:$0xff]
    %v202 = vld [vmem:[#allocation5 + $0x4b8] sm:$0xff]
    %v203 = vld [vmem:[#allocation5 + $0x4c0] sm:$0xff]
    %v204 = vld [vmem:[#allocation5 + $0x4c8] sm:$0xff]
    %v205 = vld [vmem:[#allocation5 + $0x4d0] sm:$0xff]
    %v206 = vld [vmem:[#allocation5 + $0x4d8] sm:$0xff]
    %v207 = vld [vmem:[#allocation5 + $0x4e0] sm:$0xff]
    %v208 = vld [vmem:[#allocation5 + $0x4e8] sm:$0xff]
    %v209 = vld [vmem:[#allocation5 + $0x4f0] sm:$0xff]
    %v210 = vld [vmem:[#allocation5 + $0x4f8] sm:$0xff]
    %v211 = vld [vmem:[#allocation5 + $0x500] sm:$0xff]
    %v212 = vld [vmem:[#allocation5 + $0x508] sm:$0xff]
    %v213 = vld [vmem:[#allocation5 + $0x510] sm:$0xff]
    %v214 = vld [vmem:[#allocation5 + $0x518] sm:$0xff]
    %v215 = vld [vmem:[#allocation5 + $0x520] sm:$0xff]
    %v216 = vld [vmem:[#allocation5 + $0x528] sm:$0xff]
    %v217 = vld [vmem:[#allocation5 + $0x530] sm:$0xff]
    %v218 = vld [vmem:[#allocation5 + $0x538] sm:$0xff]
    %v219 = vld [vmem:[#allocation5 + $0x540] sm:$0xff]
    %v220 = vld [vmem:[#allocation5 + $0x548] sm:$0xff]
    %v221 = vld [vmem:[#allocation5 + $0x550] sm:$0xff]
    %v222 = vld [vmem:[#allocation5 + $0x558] sm:$0xff]
    %v223 = vld [vmem:[#allocation5 + $0x560] sm:$0xff]
    %v224 = vld [vmem:[#allocation5 + $0x568] sm:$0xff]
    %v225 = vld [vmem:[#allocation5 + $0x570] sm:$0xff]
    %v226 = vld [vmem:[#allocation5 + $0x578] sm:$0xff]
    %v227 = vld [vmem:[#allocation5 + $0x580] sm:$0xff]
    %v228 = vld [vmem:[#allocation5 + $0x588] sm:$0xff]
    %v229 = vld [vmem:[#allocation5 + $0x590] sm:$0xff]
    %v230 = vld [vmem:[#allocation5 + $0x598] sm:$0xff]
    %v231 = vld [vmem:[#allocation5 + $0x5a0] sm:$0xff]
    %v232 = vld [vmem:[#allocation5 + $0x5a8] sm:$0xff]
    %v233 = vld [vmem:[#allocation5 + $0x5b0] sm:$0xff]
    %v234 = vld [vmem:[#allocation5 + $0x5b8] sm:$0xff]
    %v235 = vld [vmem:[#allocation5 + $0x5c0] sm:$0xff]
    %v236 = vld [vmem:[#allocation5 + $0x5c8] sm:$0xff]
    %v237 = vld [vmem:[#allocation5 + $0x5d0] sm:$0xff]
    %v238 = vld [vmem:[#allocation5 + $0x5d8] sm:$0xff]
    %v239 = vld [vmem:[#allocation5 + $0x5e0] sm:$0xff]
    %v240 = vld [vmem:[#allocation5 + $0x5e8] sm:$0xff]
    %v241 = vld [vmem:[#allocation5 + $0x5f0] sm:$0xff]
    %v242 = vld [vmem:[#allocation5 + $0x5f8] sm:$0xff]
    %v243 = vld [vmem:[#allocation5 + $0x600] sm:$0xff]
    %v244 = vld [vmem:[#allocation5 + $0x608] sm:$0xff]
    %v245 = vld [vmem:[#allocation5 + $0x610] sm:$0xff]
    %v246 = vld [vmem:[#allocation5 + $0x618] sm:$0xff]
    %v247 = vld [vmem:[#allocation5 + $0x620] sm:$0xff]
    %v248 = vld [vmem:[#allocation5 + $0x628] sm:$0xff]
    %v249 = vld [vmem:[#allocation5 + $0x630] sm:$0xff]
    %v250 = vld [vmem:[#allocation5 + $0x638] sm:$0xff]
    %v251 = vld [vmem:[#allocation5 + $0x640] sm:$0xff]
    %v252 = vld [vmem:[#allocation5 + $0x648] sm:$0xff]
    %v253 = vld [vmem:[#allocation5 + $0x650] sm:$0xff]
    %v254 = vld [vmem:[#allocation5 + $0x658] sm:$0xff]
    %v255 = vld [vmem:[#allocation5 + $0x660] sm:$0xff]
    %v256 = vld [vmem:[#allocation5 + $0x668] sm:$0xff]
    %v257 = vld [vmem:[#allocation5 + $0x670] sm:$0xff]
    %v258 = vld [vmem:[#allocation5 + $0x678] sm:$0xff]
    %v259 = vld [vmem:[#allocation5 + $0x680] sm:$0xff]
    %v260 = vld [vmem:[#allocation5 + $0x688] sm:$0xff]
    %v261 = vld [vmem:[#allocation5 + $0x690] sm:$0xff]
    %v262 = vld [vmem:[#allocation5 + $0x698] sm:$0xff]
    %v263 = vld [vmem:[#allocation5 + $0x6a0] sm:$0xff]
    %v264 = vld [vmem:[#allocation5 + $0x6a8] sm:$0xff]
    %v265 = vld [vmem:[#allocation5 + $0x6b0] sm:$0xff]
    %v266 = vld [vmem:[#allocation5 + $0x6b8] sm:$0xff]
    %v267 = vld [vmem:[#allocation5 + $0x6c0] sm:$0xff]
    %v268 = vld [vmem:[#allocation5 + $0x6c8] sm:$0xff]
    %v269 = vld [vmem:[#allocation5 + $0x6d0] sm:$0xff]
    %v270 = vld [vmem:[#allocation5 + $0x6d8] sm:$0xff]
    %v271 = vld [vmem:[#allocation5 + $0x6e0] sm:$0xff]
    %v272 = vld [vmem:[#allocation5 + $0x6e8] sm:$0xff]
    %v273 = vld [vmem:[#allocation5 + $0x6f0] sm:$0xff]
    %v274 = vld [vmem:[#allocation5 + $0x6f8] sm:$0xff]
    %v275 = vld [vmem:[#allocation5 + $0x700] sm:$0xff]
    %v276 = vld [vmem:[#allocation5 + $0x708] sm:$0xff]
    %v277 = vld [vmem:[#allocation5 + $0x710] sm:$0xff]
    %v278 = vld [vmem:[#allocation5 + $0x718] sm:$0xff]
    %v279 = vld [vmem:[#allocation5 + $0x720] sm:$0xff]
    %v280 = vld [vmem:[#allocation5 + $0x728] sm:$0xff]
    %v281 = vld [vmem:[#allocation5 + $0x730] sm:$0xff]
    %v282 = vld [vmem:[#allocation5 + $0x738] sm:$0xff]
    %v283 = vld [vmem:[#allocation5 + $0x740] sm:$0xff]
    %v284 = vld [vmem:[#allocation5 + $0x748] sm:$0xff]
    %v285 = vld [vmem:[#allocation5 + $0x750] sm:$0xff]
    %v286 = vld [vmem:[#allocation5 + $0x758] sm:$0xff]
    %v287 = vld [vmem:[#allocation5 + $0x760] sm:$0xff]
    %v288 = vld [vmem:[#allocation5 + $0x768] sm:$0xff]
    %v289 = vld [vmem:[#allocation5 + $0x770] sm:$0xff]
    %v290 = vld [vmem:[#allocation5 + $0x778] sm:$0xff]
    %v291 = vld [vmem:[#allocation5 + $0x780] sm:$0xff]
    %v292 = vld [vmem:[#allocation5 + $0x788] sm:$0xff]
    %v293 = vld [vmem:[#allocation5 + $0x790] sm:$0xff]
    %v294 = vld [vmem:[#allocation5 + $0x798] sm:$0xff]
    %v295 = vld [vmem:[#allocation5 + $0x7a0] sm:$0xff]
    %v296 = vld [vmem:[#allocation5 + $0x7a8] sm:$0xff]
    %v297 = vld [vmem:[#allocation5 + $0x7b0] sm:$0xff]
    %v298 = vld [vmem:[#allocation5 + $0x7b8] sm:$0xff]
    %v299 = vld [vmem:[#allocation5 + $0x7c0] sm:$0xff]
    %v300 = vld [vmem:[#allocation5 + $0x7c8] sm:$0xff]
    %v301 = vld [vmem:[#allocation5 + $0x7d0] sm:$0xff]
    %v302 = vld [vmem:[#allocation5 + $0x7d8] sm:$0xff]
    %v303 = vld [vmem:[#allocation5 + $0x7e0] sm:$0xff]
    %v304 = vld [vmem:[#allocation5 + $0x7e8] sm:$0xff]
    %v305 = vld [vmem:[#allocation5 + $0x7f0] sm:$0xff]
    %v306 = vld [vmem:[#allocation5 + $0x7f8] sm:$0xff]
    %v307 = vld [vmem:[%s2] sm:$0xf]
    %v309 = vlaneseq
    %v310 = vshrl.u32 %v309, 7
    %v311 = vsub.s32 0, %v310
    %v312 = vrot.slane %v307, %v311
    %v313 = vlaneseq
    %v314 = vshrl.u32 %v313, 7
    %v315 = vsub.s32 1, %v314
    %v316 = vrot.slane %v307, %v315
    %v317 = vlaneseq
    %v318 = vshrl.u32 %v317, 7
    %v319 = vsub.s32 2, %v318
    %v320 = vrot.slane %v307, %v319
    %v321 = vlaneseq
    %v322 = vshrl.u32 %v321, 7
    %v323 = vsub.s32 3, %v322
    %v324 = vrot.slane %v307, %v323
    %329 = vmatprep.subr.mxu0 %v52
    %330 = vmatpush1.xpose.msra.mxu0 %v51
    %331 = vmatprep.subr.mxu0 %v56
    %332 = vmatpush1.xpose.msra.mxu0 %v55
    %333 = vmatprep.subr.mxu0 %v60
    %334 = vmatpush1.xpose.msra.mxu0 %v59
    %335 = vmatprep.subr.mxu0 %v64
    %336 = vmatpush1.xpose.msra.mxu0 %v63
    %337 = vmatprep.subr.mxu0 %v68
    %338 = vmatpush1.xpose.msra.mxu0 %v67
    %339 = vmatprep.subr.mxu0 %v72
    %340 = vmatpush1.xpose.msra.mxu0 %v71
    %341 = vmatprep.subr.mxu0 %v76
    %342 = vmatpush1.xpose.msra.mxu0 %v75
    %343 = vmatprep.subr.mxu0 %v80
    %344 = vmatpush1.xpose.msra.mxu0 %v79
    %345 = vmatprep.subr.mxu0 %v84
    %346 = vmatpush1.xpose.msra.mxu0 %v83
    %347 = vmatprep.subr.mxu0 %v88
    %348 = vmatpush1.xpose.msra.mxu0 %v87
    %349 = vmatprep.subr.mxu0 %v92
    %350 = vmatpush1.xpose.msra.mxu0 %v91
    %351 = vmatprep.subr.mxu0 %v96
    %352 = vmatpush1.xpose.msra.mxu0 %v95
    %353 = vmatprep.subr.mxu0 %v100
    %354 = vmatpush1.xpose.msra.mxu0 %v99
    %355 = vmatprep.subr.mxu0 %v104
    %356 = vmatpush1.xpose.msra.mxu0 %v103
    %357 = vmatprep.subr.mxu0 %v108
    %358 = vmatpush1.xpose.msra.mxu0 %v107
    %359 = vmatprep.subr.mxu0 %v112
    %360 = vmatpush1.xpose.msra.mxu0 %v111
    %361 = vmatprep.subr.mxu0 %v116
    %362 = vmatpush1.xpose.msra.mxu0 %v115
    %363 = vmatprep.subr.mxu0 %v120
    %364 = vmatpush1.xpose.msra.mxu0 %v119
    %365 = vmatprep.subr.mxu0 %v124
    %366 = vmatpush1.xpose.msra.mxu0 %v123
    %367 = vmatprep.subr.mxu0 %v128
    %368 = vmatpush1.xpose.msra.mxu0 %v127
    %369 = vmatprep.subr.mxu0 %v132
    %370 = vmatpush1.xpose.msra.mxu0 %v131
    %371 = vmatprep.subr.mxu0 %v136
    %372 = vmatpush1.xpose.msra.mxu0 %v135
    %373 = vmatprep.subr.mxu0 %v140
    %374 = vmatpush1.xpose.msra.mxu0 %v139
    %375 = vmatprep.subr.mxu0 %v144
    %376 = vmatpush1.xpose.msra.mxu0 %v143
    %377 = vmatprep.subr.mxu0 %v148
    %378 = vmatpush1.xpose.msra.mxu0 %v147
    %379 = vmatprep.subr.mxu0 %v152
    %380 = vmatpush1.xpose.msra.mxu0 %v151
    %381 = vmatprep.subr.mxu0 %v156
    %382 = vmatpush1.xpose.msra.mxu0 %v155
    %383 = vmatprep.subr.mxu0 %v160
    %384 = vmatpush1.xpose.msra.mxu0 %v159
    %385 = vmatprep.subr.mxu0 %v164
    %386 = vmatpush1.xpose.msra.mxu0 %v163
    %387 = vmatprep.subr.mxu0 %v168
    %388 = vmatpush1.xpose.msra.mxu0 %v167
    %389 = vmatprep.subr.mxu0 %v172
    %390 = vmatpush1.xpose.msra.mxu0 %v171
    %391 = vmatprep.subr.mxu0 %v176
    %392 = vmatpush1.xpose.msra.mxu0 %v175
    %393 = vmatprep.mubr.f32.mxu0 %v44
    %394 = vmatmul.mubr.f32.gmra.mrb[0].mxu0 %v43
    %v395 = vpop.f32.mrb[0].mxu0
    %v396 = vadd.f32 %v312, %v395
    %v397 = vpop.f32.mrb[0].mxu0
    %v398 = vadd.f32 %v316, %v397
    %399 = vmatprep.mubr.f32.mxu0 %v48
    %400 = vmatmul.mubr.f32.gmra.mrb[0].mxu0 %v47
    %v401 = vpop.f32.mrb[0].mxu0
    %v402 = vadd.f32 %v312, %v401
    %v403 = vpop.f32.mrb[0].mxu0
    %v404 = vadd.f32 %v316, %v403
    %405 = vdwg.mxu0
    %406 = vmatprep.subr.mxu0 %v54
    %407 = vmatpush1.xpose.msra.mxu0 %v53
    %408 = vmatprep.subr.mxu0 %v58
    %409 = vmatpush1.xpose.msra.mxu0 %v57
    %410 = vmatprep.subr.mxu0 %v62
    %411 = vmatpush1.xpose.msra.mxu0 %v61
    %412 = vmatprep.subr.mxu0 %v66
    %413 = vmatpush1.xpose.msra.mxu0 %v65
    %414 = vmatprep.subr.mxu0 %v70
    %415 = vmatpush1.xpose.msra.mxu0 %v69
    %416 = vmatprep.subr.mxu0 %v74
    %417 = vmatpush1.xpose.msra.mxu0 %v73
    %418 = vmatprep.subr.mxu0 %v78
    %419 = vmatpush1.xpose.msra.mxu0 %v77
    %420 = vmatprep.subr.mxu0 %v82
    %421 = vmatpush1.xpose.msra.mxu0 %v81
    %422 = vmatprep.subr.mxu0 %v86
    %423 = vmatpush1.xpose.msra.mxu0 %v85
    %424 = vmatprep.subr.mxu0 %v90
    %425 = vmatpush1.xpose.msra.mxu0 %v89
    %426 = vmatprep.subr.mxu0 %v94
    %427 = vmatpush1.xpose.msra.mxu0 %v93
    %428 = vmatprep.subr.mxu0 %v98
    %429 = vmatpush1.xpose.msra.mxu0 %v97
    %430 = vmatprep.subr.mxu0 %v102
    %431 = vmatpush1.xpose.msra.mxu0 %v101
    %432 = vmatprep.subr.mxu0 %v106
    %433 = vmatpush1.xpose.msra.mxu0 %v105
    %434 = vmatprep.subr.mxu0 %v110
    %435 = vmatpush1.xpose.msra.mxu0 %v109
    %436 = vmatprep.subr.mxu0 %v114
    %437 = vmatpush1.xpose.msra.mxu0 %v113
    %438 = vmatprep.subr.mxu0 %v118
    %439 = vmatpush1.xpose.msra.mxu0 %v117
    %440 = vmatprep.subr.mxu0 %v122
    %441 = vmatpush1.xpose.msra.mxu0 %v121
    %442 = vmatprep.subr.mxu0 %v126
    %443 = vmatpush1.xpose.msra.mxu0 %v125
    %444 = vmatprep.subr.mxu0 %v130
    %445 = vmatpush1.xpose.msra.mxu0 %v129
    %446 = vmatprep.subr.mxu0 %v134
    %447 = vmatpush1.xpose.msra.mxu0 %v133
    %448 = vmatprep.subr.mxu0 %v138
    %449 = vmatpush1.xpose.msra.mxu0 %v137
    %450 = vmatprep.subr.mxu0 %v142
    %451 = vmatpush1.xpose.msra.mxu0 %v141
    %452 = vmatprep.subr.mxu0 %v146
    %453 = vmatpush1.xpose.msra.mxu0 %v145
    %454 = vmatprep.subr.mxu0 %v150
    %455 = vmatpush1.xpose.msra.mxu0 %v149
    %456 = vmatprep.subr.mxu0 %v154
    %457 = vmatpush1.xpose.msra.mxu0 %v153
    %458 = vmatprep.subr.mxu0 %v158
    %459 = vmatpush1.xpose.msra.mxu0 %v157
    %460 = vmatprep.subr.mxu0 %v162
    %461 = vmatpush1.xpose.msra.mxu0 %v161
    %462 = vmatprep.subr.mxu0 %v166
    %463 = vmatpush1.xpose.msra.mxu0 %v165
    %464 = vmatprep.subr.mxu0 %v170
    %465 = vmatpush1.xpose.msra.mxu0 %v169
    %466 = vmatprep.subr.mxu0 %v174
    %467 = vmatpush1.xpose.msra.mxu0 %v173
    %468 = vmatprep.subr.mxu0 %v178
    %469 = vmatpush1.xpose.msra.mxu0 %v177
    %470 = vmatprep.mubr.f32.mxu0 %v46
    %471 = vmatmul.mubr.f32.gmra.mrb[0].mxu0 %v45
    %v472 = vpop.f32.mrb[0].mxu0
    %v473 = vadd.f32 %v396, %v472
    %v474 = vpop.f32.mrb[0].mxu0
    %v475 = vadd.f32 %v398, %v474
    %476 = vmatprep.mubr.f32.mxu0 %v50
    %477 = vmatmul.mubr.f32.gmra.mrb[0].mxu0 %v49
    %v478 = vpop.f32.mrb[0].mxu0
    %v479 = vadd.f32 %v402, %v478
    %v480 = vpop.f32.mrb[0].mxu0
    %v481 = vadd.f32 %v404, %v480
    %482 = vdwg.mxu0
    %483 = vmatprep.subr.mxu0 %v180
    %484 = vmatpush1.xpose.msra.mxu0 %v179
    %485 = vmatprep.subr.mxu0 %v184
    %486 = vmatpush1.xpose.msra.mxu0 %v183
    %487 = vmatprep.subr.mxu0 %v188
    %488 = vmatpush1.xpose.msra.mxu0 %v187
    %489 = vmatprep.subr.mxu0 %v192
    %490 = vmatpush1.xpose.msra.mxu0 %v191
    %491 = vmatprep.subr.mxu0 %v196
    %492 = vmatpush1.xpose.msra.mxu0 %v195
    %493 = vmatprep.subr.mxu0 %v200
    %494 = vmatpush1.xpose.msra.mxu0 %v199
    %495 = vmatprep.subr.mxu0 %v204
    %496 = vmatpush1.xpose.msra.mxu0 %v203
    %497 = vmatprep.subr.mxu0 %v208
    %498 = vmatpush1.xpose.msra.mxu0 %v207
    %499 = vmatprep.subr.mxu0 %v212
    %500 = vmatpush1.xpose.msra.mxu0 %v211
    %501 = vmatprep.subr.mxu0 %v216
    %502 = vmatpush1.xpose.msra.mxu0 %v215
    %503 = vmatprep.subr.mxu0 %v220
    %504 = vmatpush1.xpose.msra.mxu0 %v219
    %505 = vmatprep.subr.mxu0 %v224
    %506 = vmatpush1.xpose.msra.mxu0 %v223
    %507 = vmatprep.subr.mxu0 %v228
    %508 = vmatpush1.xpose.msra.mxu0 %v227
    %509 = vmatprep.subr.mxu0 %v232
    %510 = vmatpush1.xpose.msra.mxu0 %v231
    %511 = vmatprep.subr.mxu0 %v236
    %512 = vmatpush1.xpose.msra.mxu0 %v235
    %513 = vmatprep.subr.mxu0 %v240
    %514 = vmatpush1.xpose.msra.mxu0 %v239
    %515 = vmatprep.subr.mxu0 %v244
    %516 = vmatpush1.xpose.msra.mxu0 %v243
    %517 = vmatprep.subr.mxu0 %v248
    %518 = vmatpush1.xpose.msra.mxu0 %v247
    %519 = vmatprep.subr.mxu0 %v252
    %520 = vmatpush1.xpose.msra.mxu0 %v251
    %521 = vmatprep.subr.mxu0 %v256
    %522 = vmatpush1.xpose.msra.mxu0 %v255
    %523 = vmatprep.subr.mxu0 %v260
    %524 = vmatpush1.xpose.msra.mxu0 %v259
    %525 = vmatprep.subr.mxu0 %v264
    %526 = vmatpush1.xpose.msra.mxu0 %v263
    %527 = vmatprep.subr.mxu0 %v268
    %528 = vmatpush1.xpose.msra.mxu0 %v267
    %529 = vmatprep.subr.mxu0 %v272
    %530 = vmatpush1.xpose.msra.mxu0 %v271
    %531 = vmatprep.subr.mxu0 %v276
    %532 = vmatpush1.xpose.msra.mxu0 %v275
    %533 = vmatprep.subr.mxu0 %v280
    %534 = vmatpush1.xpose.msra.mxu0 %v279
    %535 = vmatprep.subr.mxu0 %v284
    %536 = vmatpush1.xpose.msra.mxu0 %v283
    %537 = vmatprep.subr.mxu0 %v288
    %538 = vmatpush1.xpose.msra.mxu0 %v287
    %539 = vmatprep.subr.mxu0 %v292
    %540 = vmatpush1.xpose.msra.mxu0 %v291
    %541 = vmatprep.subr.mxu0 %v296
    %542 = vmatpush1.xpose.msra.mxu0 %v295
    %543 = vmatprep.subr.mxu0 %v300
    %544 = vmatpush1.xpose.msra.mxu0 %v299
    %545 = vmatprep.subr.mxu0 %v304
    %546 = vmatpush1.xpose.msra.mxu0 %v303
    %547 = vmatprep.mubr.f32.mxu0 %v44
    %548 = vmatmul.mubr.f32.gmra.mrb[0].mxu0 %v43
    %v549 = vpop.f32.mrb[0].mxu0
    %v550 = vadd.f32 %v320, %v549
    %v551 = vpop.f32.mrb[0].mxu0
    %v552 = vadd.f32 %v324, %v551
    %553 = vmatprep.mubr.f32.mxu0 %v48
    %554 = vmatmul.mubr.f32.gmra.mrb[0].mxu0 %v47
    %v555 = vpop.f32.mrb[0].mxu0
    %v556 = vadd.f32 %v320, %v555
    %v557 = vpop.f32.mrb[0].mxu0
    %v558 = vadd.f32 %v324, %v557
    %559 = vdwg.mxu0
    %560 = vmatprep.subr.mxu0 %v182
    %561 = vmatpush1.xpose.msra.mxu0 %v181
    %562 = vmatprep.subr.mxu0 %v186
    %563 = vmatpush1.xpose.msra.mxu0 %v185
    %564 = vmatprep.subr.mxu0 %v190
    %565 = vmatpush1.xpose.msra.mxu0 %v189
    %566 = vmatprep.subr.mxu0 %v194
    %567 = vmatpush1.xpose.msra.mxu0 %v193
    %568 = vmatprep.subr.mxu0 %v198
    %569 = vmatpush1.xpose.msra.mxu0 %v197
    %570 = vmatprep.subr.mxu0 %v202
    %571 = vmatpush1.xpose.msra.mxu0 %v201
    %572 = vmatprep.subr.mxu0 %v206
    %573 = vmatpush1.xpose.msra.mxu0 %v205
    %574 = vmatprep.subr.mxu0 %v210
    %575 = vmatpush1.xpose.msra.mxu0 %v209
    %576 = vmatprep.subr.mxu0 %v214
    %577 = vmatpush1.xpose.msra.mxu0 %v213
    %578 = vmatprep.subr.mxu0 %v218
    %579 = vmatpush1.xpose.msra.mxu0 %v217
    %580 = vmatprep.subr.mxu0 %v222
    %581 = vmatpush1.xpose.msra.mxu0 %v221
    %582 = vmatprep.subr.mxu0 %v226
    %583 = vmatpush1.xpose.msra.mxu0 %v225
    %584 = vmatprep.subr.mxu0 %v230
    %585 = vmatpush1.xpose.msra.mxu0 %v229
    %586 = vmatprep.subr.mxu0 %v234
    %587 = vmatpush1.xpose.msra.mxu0 %v233
    %588 = vmatprep.subr.mxu0 %v238
    %589 = vmatpush1.xpose.msra.mxu0 %v237
    %590 = vmatprep.subr.mxu0 %v242
    %591 = vmatpush1.xpose.msra.mxu0 %v241
    %592 = vmatprep.subr.mxu0 %v246
    %593 = vmatpush1.xpose.msra.mxu0 %v245
    %594 = vmatprep.subr.mxu0 %v250
    %595 = vmatpush1.xpose.msra.mxu0 %v249
    %596 = vmatprep.subr.mxu0 %v254
    %597 = vmatpush1.xpose.msra.mxu0 %v253
    %598 = vmatprep.subr.mxu0 %v258
    %599 = vmatpush1.xpose.msra.mxu0 %v257
    %600 = vmatprep.subr.mxu0 %v262
    %601 = vmatpush1.xpose.msra.mxu0 %v261
    %602 = vmatprep.subr.mxu0 %v266
    %603 = vmatpush1.xpose.msra.mxu0 %v265
    %604 = vmatprep.subr.mxu0 %v270
    %605 = vmatpush1.xpose.msra.mxu0 %v269
    %606 = vmatprep.subr.mxu0 %v274
    %607 = vmatpush1.xpose.msra.mxu0 %v273
    %608 = vmatprep.subr.mxu0 %v278
    %609 = vmatpush1.xpose.msra.mxu0 %v277
    %610 = vmatprep.subr.mxu0 %v282
    %611 = vmatpush1.xpose.msra.mxu0 %v281
    %612 = vmatprep.subr.mxu0 %v286
    %613 = vmatpush1.xpose.msra.mxu0 %v285
    %614 = vmatprep.subr.mxu0 %v290
    %615 = vmatpush1.xpose.msra.mxu0 %v289
    %616 = vmatprep.subr.mxu0 %v294
    %617 = vmatpush1.xpose.msra.mxu0 %v293
    %618 = vmatprep.subr.mxu0 %v298
    %619 = vmatpush1.xpose.msra.mxu0 %v297
    %620 = vmatprep.subr.mxu0 %v302
    %621 = vmatpush1.xpose.msra.mxu0 %v301
    %622 = vmatprep.subr.mxu0 %v306
    %623 = vmatpush1.xpose.msra.mxu0 %v305
    %624 = vmatprep.mubr.f32.mxu0 %v46
    %625 = vmatmul.mubr.f32.gmra.mrb[0].mxu0 %v45
    %v626 = vpop.f32.mrb[0].mxu0
    %v627 = vadd.f32 %v550, %v626
    %v628 = vpop.f32.mrb[0].mxu0
    %v629 = vadd.f32 %v552, %v628
    %630 = vmatprep.mubr.f32.mxu0 %v50
    %631 = vmatmul.mubr.f32.gmra.mrb[0].mxu0 %v49
    %v632 = vpop.f32.mrb[0].mxu0
    %v633 = vadd.f32 %v556, %v632
    %v634 = vpop.f32.mrb[0].mxu0
    %v635 = vadd.f32 %v558, %v634
    %636 = vdwg.mxu0
    %637 = vst [vmem:[#allocation7] sm:$0xff] %v473
    %638 = vst [vmem:[#allocation7 + $0x8] sm:$0xff] %v475
    %639 = vst [vmem:[#allocation7 + $0x10] sm:$0xff] %v627
    %640 = vst [vmem:[#allocation7 + $0x18] sm:$0xff] %v629
    %641 = vst [vmem:[#allocation7 + $0x20] sm:$0xff] %v479
    %642 = vst [vmem:[#allocation7 + $0x28] sm:$0xff] %v481
    %643 = vst [vmem:[#allocation7 + $0x30] sm:$0xff] %v633
    %644 = vst [vmem:[#allocation7 + $0x38] sm:$0xff] %v635
    // Predicated region
    $region22: #{tpu_custom_call.1} parent=1 // pred_check
      _
    $region23: #{tpu_custom_call.1} parent=1 // pred_check_branch
      %646 = sbr.rel (0) target = $region25
    $region24: #{tpu_custom_call.1} parent=1 // pred_region
      %s648 = ssub.s32 1024, 1024
      %649 = vsyncadd [#allocation4], %s648
      %s650 = sshll.u32 [#allocation7], 4
      %s651 = int_to_ptr.vmem [resolvable:$true] %s650
      %656 = dma.vmem_to_hbm [thread:$0]  %s651, 1024, %s3, [#allocation4], 512, 512, 32
    $region25: #{tpu_custom_call.1} parent=1 // pred_fallthru
      _
    // Predicated region
    $region26: #{tpu_custom_call.1} parent=1 // pred_check
      _
    $region27: #{tpu_custom_call.1} parent=1 // pred_check_branch
      %658 = sbr.rel (0) target = $region29
    $region28: #{tpu_custom_call.1} parent=1 // pred_region
      %659 = dma.done [#allocation4], 1024
    $region29: #{tpu_custom_call.1} parent=1 // pred_fallthru
      _
    %660 = vsyncpa [#allocation3], 1
    %661 = vsyncpa [#allocation6], 1
    %662 = vsyncpa [#allocation4], 1

</llo_original>
